<compile_context>
chip_gen: v6e
topology: v6e:2x2x1
jax: 0.10.0
libtpu: 0.0.40
codegen_flags: <defaults>
</compile_context>

<pallas_src>
import functools

import jax
import jax.numpy as jnp
from jax.experimental import pallas as pl
from jax.experimental.pallas import tpu as pltpu

_HALO = 128  # lane-dense halo block; requires K - 1 <= 128


def _tcs_kernel(xm_ref, xh_ref, wdw_ref, wpw_ref, b_ref, o_ref, *, K, Tt, dw_dtype):
    # xm_ref:  (1, C, Tt)        main input tile (from the zero-padded input)
    # xh_ref:  (1, C, 128)       halo: next 128 lanes of the padded input
    # wdw_ref: (C, K)      f32   depthwise taps
    # wpw_ref: (C_out, C)  bf16  pointwise weights
    # b_ref:   (C_out, 1)  f32   fused bias  (Wpw @ b_dw + b_pw)
    # o_ref:   (1, C_out, Tt)
    full = jnp.concatenate(
        [xm_ref[0].astype(dw_dtype), xh_ref[0].astype(dw_dtype)], axis=-1
    )  # (C, Tt + 128) in the depthwise compute dtype
    w_full = Tt + _HALO
    wdw = wdw_ref[...].astype(dw_dtype)  # (C, K) -- tiny

    # Depthwise conv: K shifted MACs (unrolled).  The tap shift runs on the XLU via a
    # circular lane roll; keep the lane-aligned leading Tt columns (no wraparound can
    # reach them because K - 1 <= 128).
    acc = wdw[:, 0:1] * full[:, :Tt]
    for k in range(1, K):
        shifted = pltpu.roll(full, w_full - k, 1)  # == full[:, k:k+Tt] on [:, :Tt]
        acc = acc + wdw[:, k:k + 1] * shifted[:, :Tt]

    # Pointwise conv: bf16 MXU matmul over channels with f32 accumulation.
    out = jnp.dot(wpw_ref[...], acc.astype(jnp.bfloat16),
                  preferred_element_type=jnp.float32)  # (C_out, Tt) f32
    out = out + b_ref[...]
    o_ref[0] = out.astype(o_ref.dtype)


def _round_up(x, m):
    return (x + m - 1) // m * m


def _tpu_generation():
    """Best-effort TPU generation from device_kind; None if undetermined."""
    try:
        kind = jax.devices()[0].device_kind.lower()
    except Exception:
        return None
    for tags, gen in ((("v7", "7x"), 7), (("v6", "6e"), 6),
                      (("v5", "5e", "5p"), 5), (("v4",), 4)):
        if any(t in kind for t in tags):
            return gen
    return None


def _vmem_capacity_bytes(gen):
    try:
        cap = int(getattr(pltpu.get_tpu_info(), "vmem_capacity_bytes", 0))
        if cap >= (16 << 20):
            return cap
    except Exception:
        pass
    return (64 << 20) if (gen is not None and gen >= 7) else (128 << 20)


def _select_config(B, T, C, C_out, K, in_b, out_b):
    """Pick (Tt, depthwise compute dtype, vmem_limit) per TPU generation."""
    gen = _tpu_generation()
    cap = _vmem_capacity_bytes(gen)
    if gen is not None and gen >= 7:        # v7x: 64 MiB/TC, 2 TensorCores, bf16 VPU
        budget = min(48 << 20, cap - (16 << 20))
        candidates, n_cores, dw_dtype = (512, 256, 128), 2, jnp.bfloat16
    elif gen == 6:                          # v6e: 128 MiB VMEM, 1 TC, bf16 VPU
        budget = min(100 << 20, cap - (24 << 20))
        candidates, n_cores, dw_dtype = (1024, 512, 256, 128), 1, jnp.bfloat16
    elif gen in (4, 5):                     # v4/v5e/v5p: 128 MiB, no bf16 VALU
        budget = min(100 << 20, cap - (24 << 20))
        candidates, n_cores, dw_dtype = (1024, 512, 256, 128), 1, jnp.float32
    else:                                   # unknown backend: be conservative
        budget = 32 << 20
        candidates, n_cores, dw_dtype = (512, 256, 128), 2, jnp.float32

    def est(tt):  # f32 temporaries assumed: upper bound valid for both dw dtypes
        blocks = 2 * (C * tt * in_b + C * _HALO * in_b + C_out * tt * out_b)
        weights = 2 * (C * K * 4 + C_out * C * 2 + C_out * 4)
        temps = (2 * C * (tt + _HALO) + C * tt) * 4 + 2 * C_out * tt * 4
        return blocks + weights + temps + (2 << 20)

    T128 = _round_up(max(T, 1), 128)
    usable = [tt for tt in candidates if tt <= max(T128, 128) and est(tt) <= budget]
    if not usable:
        usable = [128]
    tt = usable[0]
    if n_cores > 1:  # megacore occupancy guard: avoid a degenerate grid on v7x
        for cand in usable:
            if B * (-(-T128 // cand)) >= n_cores:
                tt = cand
                break
    vmem_limit = int(min(max(est(tt) + (4 << 20), 16 << 20), cap - (8 << 20)))
    return tt, dw_dtype, vmem_limit


def tcs_conv(x, w_dw, b_dw, w_pw, b_pw):
    """x: (B, C_in, T); w_dw: (C_in, 1, K); b_dw: (C_in,);
    w_pw: (C_out, C_in, 1); b_pw: (C_out,).  Returns (B, C_out, T)."""
    B, C, T = x.shape
    C_out = w_pw.shape[0]
    K = w_dw.shape[-1]
    assert K % 2 == 1, "padding='same' here assumes odd kernel size"
    assert K - 1 <= _HALO, "kernel too wide for a single 128-lane halo block"
    pad = (K - 1) // 2

    Tt, dw_dtype, vmem_limit = _select_config(
        B, T, C, C_out, K, x.dtype.itemsize, x.dtype.itemsize)

    # --- time tiling: lane-dense tiles; T is padded up to a multiple of Tt ---
    T_ceil = _round_up(T, Tt)
    nt = T_ceil // Tt
    halo_stride = Tt // _HALO

    # Pad time: `pad` zeros on the left ('same'), then out to W = T_ceil + 128 so the
    # last tile's 128-lane halo block stays in range.  W stays a multiple of 128.
    W = T_ceil + _HALO
    x_pad = jnp.pad(x, ((0, 0), (0, 0), (pad, W - T - pad)))

    # --- weight prep (glue) ---
    wdw2 = w_dw.reshape(C, K).astype(jnp.float32)
    wpw2 = w_pw.reshape(C_out, C).astype(jnp.float32)
    # Fold the depthwise bias into the pointwise bias:  Wpw @ (d + b_dw) + b_pw.
    b_fused = (wpw2 @ b_dw.reshape(C, 1).astype(jnp.float32)
               + b_pw.reshape(C_out, 1).astype(jnp.float32))
    wpw_bf16 = wpw2.astype(jnp.bfloat16)

    flops = 2 * B * T_ceil * C * (K + C_out)
    bytes_accessed = (B * C * (T_ceil + nt * _HALO) * x.dtype.itemsize
                      + B * C_out * T_ceil * x.dtype.itemsize
                      + C * K * 4 + C_out * C * 2 + C_out * 4)
    cost = pl.CostEstimate(flops=int(flops), transcendentals=0,
                           bytes_accessed=int(bytes_accessed))

    def build(dwt):
        kernel = functools.partial(_tcs_kernel, K=K, Tt=Tt, dw_dtype=dwt)
        return pl.pallas_call(
            kernel,
            out_shape=jax.ShapeDtypeStruct((B, C_out, T_ceil), x.dtype),
            grid_spec=pltpu.PrefetchScalarGridSpec(
                num_scalar_prefetch=0,
                grid=(B, nt),
                in_specs=[
                    pl.BlockSpec((1, C, Tt), lambda b, t: (b, 0, t)),
                    pl.BlockSpec((1, C, _HALO),
                                 lambda b, t: (b, 0, (t + 1) * halo_stride)),
                    # Constant-index operands: revisited every step, no re-DMA.
                    pl.BlockSpec((C, K), lambda b, t: (0, 0)),
                    pl.BlockSpec((C_out, C), lambda b, t: (0, 0)),
                    pl.BlockSpec((C_out, 1), lambda b, t: (0, 0)),
                ],
                out_specs=pl.BlockSpec((1, C_out, Tt), lambda b, t: (b, 0, t)),
            ),
            compiler_params=pltpu.CompilerParams(
                dimension_semantics=("parallel", "parallel"),
                vmem_limit_bytes=vmem_limit),
            cost_estimate=cost,
        )

    try:
        out_pad = build(dw_dtype)(x_pad, x_pad, wdw2, wpw_bf16, b_fused)
    except Exception:
        if jnp.dtype(dw_dtype) == jnp.dtype(jnp.float32):
            raise
        # bf16 depthwise failed to lower on this toolchain -> proven f32 path.
        out_pad = build(jnp.float32)(x_pad, x_pad, wdw2, wpw_bf16, b_fused)

    return out_pad[:, :, :T]


def _ref_tcs(x, w_dw, b_dw, w_pw, b_pw):
    """Plain-JAX f32 reference of the PyTorch forward (for correctness check)."""
    B, C, T = x.shape
    K = w_dw.shape[-1]
    pad = (K - 1) // 2
    xp = jnp.pad(x, ((0, 0), (0, 0), (pad, pad)))
    dw = jnp.zeros((B, C, T), jnp.float32)
    for k in range(K):
        dw = dw + w_dw[:, 0, k][None, :, None] * xp[:, :, k:k + T]
    dw = dw + b_dw[None, :, None]
    out = jnp.einsum("oc,bct->bot", w_pw[:, :, 0], dw) + b_pw[None, :, None]
    return out.astype(x.dtype)


if __name__ == "__main__":
    # Small shapes consistent with the module: (B, C_in, T) -> (B, C_out, T).
    B, C_in, C_out, T, K = 2, 8, 16, 32, 5

    key = jax.random.PRNGKey(0)
    kx, kw1, kb1, kw2, kb2 = jax.random.split(key, 5)

    x = jax.random.normal(kx, (B, C_in, T), dtype=jnp.float32)
    # Parameter shapes as in the module __init__:
    #   depthwise_conv.weight: (C_in, 1, K), bias: (C_in,)
    #   pointwise_conv.weight: (C_out, C_in, 1), bias: (C_out,)
    w_dw = jax.random.normal(kw1, (C_in, 1, K), dtype=jnp.float32) * 0.1
    b_dw = jax.random.normal(kb1, (C_in,), dtype=jnp.float32) * 0.1
    w_pw = jax.random.normal(kw2, (C_out, C_in, 1), dtype=jnp.float32) * 0.1
    b_pw = jax.random.normal(kb2, (C_out,), dtype=jnp.float32) * 0.1

    out = tcs_conv(x, w_dw, b_dw, w_pw, b_pw)
    out = jax.block_until_ready(out)

    ref = _ref_tcs(x, w_dw, b_dw, w_pw, b_pw)
    assert out.shape == (B, C_out, T), out.shape
    # bf16 MXU operands (and bf16 depthwise on v6e/v7x) with f32 accumulation:
    # tolerance relaxed accordingly.
    assert jnp.allclose(out, ref, atol=2e-2, rtol=2e-2), "mismatch vs reference"

    print("KERNEL_OK")
</pallas_src>

<mosaic_0001>
module attributes {stable_mosaic.version = 11 : i64} {
  func.func @_tcs_kernel(%arg0: i32, %arg1: i32, %arg2: memref<1x8x128xf32, #tpu.memory_space<vmem>>, %arg3: memref<1x8x128xf32, #tpu.memory_space<vmem>>, %arg4: memref<8x5xf32, #tpu.memory_space<vmem>>, %arg5: memref<16x8xbf16, #tpu.memory_space<vmem>>, %arg6: memref<16x1xf32, #tpu.memory_space<vmem>>, %arg7: memref<1x16x128xf32, #tpu.memory_space<vmem>>) attributes {dimension_semantics = [#tpu.dimension_semantics<parallel>, #tpu.dimension_semantics<parallel>], iteration_bounds = array<i64: 2, 1>, scalar_prefetch = 0 : i64, scratch_operands = 0 : i64, tpu.core_type = #tpu.core_type<tc>, window_params = [{transform_indices = @transform_0, window_bounds = array<i64: 1, 8, 128>}, {transform_indices = @transform_1, window_bounds = array<i64: 1, 8, 128>}, {pipeline_mode = #tpu.pipeline_mode<synchronous>, transform_indices = @transform_2, window_bounds = array<i64: 8, 5>}, {pipeline_mode = #tpu.pipeline_mode<synchronous>, transform_indices = @transform_3, window_bounds = array<i64: 16, 8>}, {pipeline_mode = #tpu.pipeline_mode<synchronous>, transform_indices = @transform_4, window_bounds = array<i64: 16, 1>}, {transform_indices = @transform_5, window_bounds = array<i64: 1, 16, 128>}]} {
    %c0 = arith.constant 0 : index
    %c0_0 = arith.constant 0 : index
    %c0_1 = arith.constant 0 : index
    %0 = vector.load %arg2[%c0, %c0_0, %c0_1] : memref<1x8x128xf32, #tpu.memory_space<vmem>>, vector<1x8x128xf32>
    %1 = vector.shape_cast %0 : vector<1x8x128xf32> to vector<8x128xf32>
    %c0_2 = arith.constant 0 : index
    %c0_3 = arith.constant 0 : index
    %c0_4 = arith.constant 0 : index
    %2 = vector.load %arg3[%c0_2, %c0_3, %c0_4] : memref<1x8x128xf32, #tpu.memory_space<vmem>>, vector<1x8x128xf32>
    %3 = vector.shape_cast %2 : vector<1x8x128xf32> to vector<8x128xf32>
    %4 = tpu.concatenate %1, %3 in 1 : vector<8x128xf32>, vector<8x128xf32> -> vector<8x256xf32>
    %c0_5 = arith.constant 0 : index
    %c0_6 = arith.constant 0 : index
    %5 = vector.load %arg4[%c0_5, %c0_6] : memref<8x5xf32, #tpu.memory_space<vmem>>, vector<8x5xf32>
    %6 = vector.extract_strided_slice %5 {offsets = [0, 0], sizes = [8, 1], strides = [1, 1]} : vector<8x5xf32> to vector<8x1xf32>
    %7 = vector.extract_strided_slice %4 {offsets = [0, 0], sizes = [8, 128], strides = [1, 1]} : vector<8x256xf32> to vector<8x128xf32>
    %8 = vector.broadcast %6 : vector<8x1xf32> to vector<8x128xf32>
    %9 = arith.mulf %8, %7 : vector<8x128xf32>
    %c255_i32 = arith.constant 255 : i32
    %10 = tpu.dynamic_rotate %4 by %c255_i32 dim 1 : vector<8x256xf32>, i32 -> vector<8x256xf32>
    %11 = vector.extract_strided_slice %5 {offsets = [0, 1], sizes = [8, 1], strides = [1, 1]} : vector<8x5xf32> to vector<8x1xf32>
    %12 = vector.extract_strided_slice %10 {offsets = [0, 0], sizes = [8, 128], strides = [1, 1]} : vector<8x256xf32> to vector<8x128xf32>
    %13 = vector.broadcast %11 : vector<8x1xf32> to vector<8x128xf32>
    %14 = arith.mulf %13, %12 : vector<8x128xf32>
    %15 = arith.addf %9, %14 : vector<8x128xf32>
    %c254_i32 = arith.constant 254 : i32
    %16 = tpu.dynamic_rotate %4 by %c254_i32 dim 1 : vector<8x256xf32>, i32 -> vector<8x256xf32>
    %17 = vector.extract_strided_slice %5 {offsets = [0, 2], sizes = [8, 1], strides = [1, 1]} : vector<8x5xf32> to vector<8x1xf32>
    %18 = vector.extract_strided_slice %16 {offsets = [0, 0], sizes = [8, 128], strides = [1, 1]} : vector<8x256xf32> to vector<8x128xf32>
    %19 = vector.broadcast %17 : vector<8x1xf32> to vector<8x128xf32>
    %20 = arith.mulf %19, %18 : vector<8x128xf32>
    %21 = arith.addf %15, %20 : vector<8x128xf32>
    %c253_i32 = arith.constant 253 : i32
    %22 = tpu.dynamic_rotate %4 by %c253_i32 dim 1 : vector<8x256xf32>, i32 -> vector<8x256xf32>
    %23 = vector.extract_strided_slice %5 {offsets = [0, 3], sizes = [8, 1], strides = [1, 1]} : vector<8x5xf32> to vector<8x1xf32>
    %24 = vector.extract_strided_slice %22 {offsets = [0, 0], sizes = [8, 128], strides = [1, 1]} : vector<8x256xf32> to vector<8x128xf32>
    %25 = vector.broadcast %23 : vector<8x1xf32> to vector<8x128xf32>
    %26 = arith.mulf %25, %24 : vector<8x128xf32>
    %27 = arith.addf %21, %26 : vector<8x128xf32>
    %c252_i32 = arith.constant 252 : i32
    %28 = tpu.dynamic_rotate %4 by %c252_i32 dim 1 : vector<8x256xf32>, i32 -> vector<8x256xf32>
    %29 = vector.extract_strided_slice %5 {offsets = [0, 4], sizes = [8, 1], strides = [1, 1]} : vector<8x5xf32> to vector<8x1xf32>
    %30 = vector.extract_strided_slice %28 {offsets = [0, 0], sizes = [8, 128], strides = [1, 1]} : vector<8x256xf32> to vector<8x128xf32>
    %31 = vector.broadcast %29 : vector<8x1xf32> to vector<8x128xf32>
    %32 = arith.mulf %31, %30 : vector<8x128xf32>
    %33 = arith.addf %27, %32 : vector<8x128xf32>
    %c0_7 = arith.constant 0 : index
    %c0_8 = arith.constant 0 : index
    %34 = vector.load %arg5[%c0_7, %c0_8] : memref<16x8xbf16, #tpu.memory_space<vmem>>, vector<16x8xbf16>
    %35 = arith.truncf %33 : vector<8x128xf32> to vector<8x128xbf16>
    %cst = arith.constant dense<0.000000e+00> : vector<16x128xf32>
    %36 = tpu.matmul %34, %35, %cst {dimension_numbers = #tpu.dot_dimension_numbers<[1], [0], [0], [1], [0, 0, 1, 1], [], []>} : vector<16x8xbf16>, vector<8x128xbf16>, vector<16x128xf32> -> vector<16x128xf32>
    %c0_9 = arith.constant 0 : index
    %c0_10 = arith.constant 0 : index
    %37 = vector.load %arg6[%c0_9, %c0_10] : memref<16x1xf32, #tpu.memory_space<vmem>>, vector<16x1xf32>
    %38 = vector.broadcast %37 : vector<16x1xf32> to vector<16x128xf32>
    %39 = arith.addf %36, %38 : vector<16x128xf32>
    %c0_11 = arith.constant 0 : index
    %c0_12 = arith.constant 0 : index
    %c0_13 = arith.constant 0 : index
    %40 = vector.load %arg7[%c0_11, %c0_12, %c0_13] : memref<1x16x128xf32, #tpu.memory_space<vmem>>, vector<1x16x128xf32>
    %41 = vector.shape_cast %40 : vector<1x16x128xf32> to vector<16x128xf32>
    %42 = vector.shape_cast %39 : vector<16x128xf32> to vector<1x16x128xf32>
    tpu.vector_store %arg7[%c0_11, %c0_12, %c0_13], %42 {strides = array<i32>} : memref<1x16x128xf32, #tpu.memory_space<vmem>>, vector<1x16x128xf32>,
    return
  }
  func.func @transform_0(%arg0: i32, %arg1: i32) -> (i32, i32, i32) {
    %c0_i32 = arith.constant 0 : i32
    %c0_i32_0 = arith.constant 0 : i32
    return %arg0, %c0_i32, %arg1 : i32, i32, i32
  }
  func.func @transform_1(%arg0: i32, %arg1: i32) -> (i32, i32, i32) {
    %c1_i32 = arith.constant 1 : i32
    %0 = arith.addi %arg1, %c1_i32 : i32
    %c1_i32_0 = arith.constant 1 : i32
    %1 = arith.muli %0, %c1_i32_0 : i32
    %c0_i32 = arith.constant 0 : i32
    %c0_i32_1 = arith.constant 0 : i32
    return %arg0, %c0_i32, %1 : i32, i32, i32
  }
  func.func @transform_2(%arg0: i32, %arg1: i32) -> (i32, i32) {
    %c0_i32 = arith.constant 0 : i32
    %c0_i32_0 = arith.constant 0 : i32
    %c0_i32_1 = arith.constant 0 : i32
    return %c0_i32, %c0_i32_0 : i32, i32
  }
  func.func @transform_3(%arg0: i32, %arg1: i32) -> (i32, i32) {
    %c0_i32 = arith.constant 0 : i32
    %c0_i32_0 = arith.constant 0 : i32
    %c0_i32_1 = arith.constant 0 : i32
    return %c0_i32, %c0_i32_0 : i32, i32
  }
  func.func @transform_4(%arg0: i32, %arg1: i32) -> (i32, i32) {
    %c0_i32 = arith.constant 0 : i32
    %c0_i32_0 = arith.constant 0 : i32
    %c0_i32_1 = arith.constant 0 : i32
    return %c0_i32, %c0_i32_0 : i32, i32
  }
  func.func @transform_5(%arg0: i32, %arg1: i32) -> (i32, i32, i32) {
    %c0_i32 = arith.constant 0 : i32
    %c0_i32_0 = arith.constant 0 : i32
    return %arg0, %c0_i32, %arg1 : i32, i32, i32
  }
}

</mosaic_0001>

<llo_original>
// kernel: tpu_custom_call.1
$region0: #{tpu_custom_call.1}
  #allocation0 [shape = 'u32[]', space=smem, size = 0x4, offset = 0x4, fixed_abs, tag = 'smem constant byte address 0x4 - core index']
  #allocation1 [shape = 'u32[144,128]{1,0:T(1,128)}', space=vmem, size = 0x12000, scoped, tag = 'internal scratch']
  %s0 = inlined_call_operand.hbm [shape: f32[2,8,256], index: 0, kind: input, shape index: {}]
  %s1 = inlined_call_operand.hbm [shape: f32[2,8,256], index: 1, kind: input, shape index: {}]
  %s2 = inlined_call_operand.vmem [shape: f32[8,5], index: 2, kind: input, shape index: {}]
  %s3 = inlined_call_operand.vmem [shape: bf16[16,8], index: 3, kind: input, shape index: {}]
  %s4 = inlined_call_operand.vmem [shape: f32[16,1], index: 4, kind: input, shape index: {}]
  %s5 = inlined_call_operand.hbm [shape: f32[2,16,128], index: 5, kind: output, shape index: {}]
  %s6 = sld [smem:[#allocation0]]
  $region61: #{tpu_custom_call.1} parent=0
    _
  %s8 = ssub.s32 1, %s6
  %s9 = scalar_select 0, %s8, %s6
  $region1: #{tpu_custom_call.1} parent=0
    #allocation2 [shape = 'u8[8192]{0}', space=vmem, size = 0x2000, scoped, tag = 'input window, operand 0']
    #allocation3 [shape = 's32[2]{0}', space=sflag, size = 0x8, scoped, tag = 'scoped memory for tpu_custom_call.1']
    #allocation4 [shape = 's32[2]{0}', space=sflag, size = 0x8, scoped, tag = 'scoped memory for tpu_custom_call.1']
    #allocation5 [shape = 'u8[8192]{0}', space=vmem, size = 0x2000, scoped, tag = 'input window, operand 1']
    #allocation6 [shape = 's32[2]{0}', space=sflag, size = 0x8, scoped, tag = 'scoped memory for tpu_custom_call.1']
    #allocation7 [shape = 'u8[16384]{0}', space=vmem, size = 0x4000, scoped, tag = 'output window, operand 0']
    %10 = vsyncpa [#allocation3], 0
    %s11 = scalar_lea.sflag [#allocation3], 1
    %12 = vsyncpa %s11, 0
    %13 = vsyncpa [#allocation6], 0
    %s14 = scalar_lea.sflag [#allocation6], 1
    %15 = vsyncpa %s14, 0
    %16 = vsyncpa [#allocation4], 0
    %s17 = scalar_lea.sflag [#allocation4], 1
    %18 = vsyncpa %s17, 0
    loop: start=0, step=1, limit=4
    $region2: #{tpu_custom_call.1} parent=1 // loop_pre_header
      _
    $region3: #{tpu_custom_call.1} parent=1 // loop_header
      %s20 = sphi 0, %s24
      %p21 = scmp.ge.s32.totalorder %s20, 4
      %s27 = sphi 0, %s39
      %s28 = sphi 0, %s35
      %s29 = sphi 0, %s27
      %s30 = sphi 0, %s28
      %s31 = sphi 0, %s29
      %s32 = sphi 0, %s30
      %s44 = sphi 0, %s46
      %s47 = sphi 0, %s44
      %s48 = sphi 0, %s47
      %s64 = sphi 0, %s48
      %s74 = sphi 0, %s76
      %s77 = sphi 0, %s74
      %s78 = sphi 0, %s77
      %s94 = sphi 0, %s78
      %s98 = sphi 0, %s98
      %s100 = sphi 0, %s98
      %s101 = sphi 0, %s100
      %s115 = sphi 0, %s101
      %s119 = sphi 0, %s119
      %s121 = sphi 0, %s119
      %s122 = sphi 0, %s121
      %s136 = sphi 0, %s122
      %s140 = sphi 0, %s140
      %s142 = sphi 0, %s140
      %s143 = sphi 0, %s142
      %s157 = sphi 0, %s143
      %s165 = sphi 0, %s167
      %s168 = sphi 0, %s165
      %s169 = sphi 0, %s168
      %s185 = sphi 0, %s169
    $region4: #{tpu_custom_call.1} parent=1 // loop_header_branch
      %23 = sbr.rel (%p21) target = $region8
    $region5: #{tpu_custom_call.1} parent=1 // loop_body
      %s25 = ssub.s32 %s20, 1
      %s26 = ssub.s32 %s20, 2
      %s33 = sadd.s32 1, %s28
      %p34 = scmp.ge.s32.totalorder %s33, 1
      %s35 = scalar_select %p34, 0, %s33
      %s36 = sadd.s32 1, %s27
      %s37 = scalar_select %p34, %s36, %s27
      %p38 = scmp.ge.s32.totalorder %s37, 2
      %s39 = scalar_select %p38, 0, %s37
      %s40 = ssub.s32 %s27, %s39
      %s41 = ssub.s32 %s28, %s35
      %s42 = sor.u32 %s40, %s41
      %p43 = scmp.eq.s32.totalorder %s42, 0
      %s45 = sadd.s32 %s44, 1
      %s46 = scalar_select %p43, %s44, %s45
      %p49 = pneg %p43
      %p50 = scmp.eq.s32.totalorder %s20, 1
      %p51 = por %p49, %p50
      %p52 = scmp.ne.s32.totalorder %s44, %s47
      %p53 = scmp.eq.s32.totalorder %s20, 0
      %p54 = por %p52, %p53
      %p55 = scmp.ne.s32.totalorder %s44, %s47
      %p56 = scmp.eq.s32.totalorder %s25, 1
      %p57 = por %p55, %p56
      %p58 = scmp.ne.s32.totalorder %s47, %s48
      %p59 = scmp.eq.s32.totalorder %s25, 0
      %p60 = por %p58, %p59
      %p61 = scmp.ne.s32.totalorder %s47, %s48
      %p62 = scmp.eq.s32.totalorder %s26, 1
      %p63 = por %p61, %p62
      %p65 = scmp.ne.s32.totalorder %s48, %s64
      %p66 = scmp.eq.s32.totalorder %s26, 0
      %p67 = por %p65, %p66
      %s68 = sadd.s32 %s28, 1
      %s69 = sadd.s32 %s35, 1
      %s70 = ssub.s32 %s27, %s39
      %s71 = ssub.s32 %s68, %s69
      %s72 = sor.u32 %s70, %s71
      %p73 = scmp.eq.s32.totalorder %s72, 0
      %s75 = sadd.s32 %s74, 1
      %s76 = scalar_select %p73, %s74, %s75
      %p79 = pneg %p73
      %p80 = scmp.eq.s32.totalorder %s20, 1
      %p81 = por %p79, %p80
      %p82 = scmp.ne.s32.totalorder %s74, %s77
      %p83 = scmp.eq.s32.totalorder %s20, 0
      %p84 = por %p82, %p83
      %p85 = scmp.ne.s32.totalorder %s74, %s77
      %p86 = scmp.eq.s32.totalorder %s25, 1
      %p87 = por %p85, %p86
      %p88 = scmp.ne.s32.totalorder %s77, %s78
      %p89 = scmp.eq.s32.totalorder %s25, 0
      %p90 = por %p88, %p89
      %p91 = scmp.ne.s32.totalorder %s77, %s78
      %p92 = scmp.eq.s32.totalorder %s26, 1
      %p93 = por %p91, %p92
      %p95 = scmp.ne.s32.totalorder %s78, %s94
      %p96 = scmp.eq.s32.totalorder %s26, 0
      %p97 = por %p95, %p96
      %s99 = sadd.s32 %s98, 1
      %p102 = scmp.eq.s32.totalorder %s20, 1
      %p103 = scmp.ne.s32.totalorder %s98, %s100
      %p104 = scmp.eq.s32.totalorder %s20, 0
      %p105 = por %p103, %p104
      %p106 = scmp.ne.s32.totalorder %s98, %s100
      %p107 = scmp.eq.s32.totalorder %s25, 1
      %p108 = por %p106, %p107
      %p109 = scmp.ne.s32.totalorder %s100, %s101
      %p110 = scmp.eq.s32.totalorder %s25, 0
      %p111 = por %p109, %p110
      %p112 = scmp.ne.s32.totalorder %s100, %s101
      %p113 = scmp.eq.s32.totalorder %s26, 1
      %p114 = por %p112, %p113
      %p116 = scmp.ne.s32.totalorder %s101, %s115
      %p117 = scmp.eq.s32.totalorder %s26, 0
      %p118 = por %p116, %p117
      %s120 = sadd.s32 %s119, 1
      %p123 = scmp.eq.s32.totalorder %s20, 1
      %p124 = scmp.ne.s32.totalorder %s119, %s121
      %p125 = scmp.eq.s32.totalorder %s20, 0
      %p126 = por %p124, %p125
      %p127 = scmp.ne.s32.totalorder %s119, %s121
      %p128 = scmp.eq.s32.totalorder %s25, 1
      %p129 = por %p127, %p128
      %p130 = scmp.ne.s32.totalorder %s121, %s122
      %p131 = scmp.eq.s32.totalorder %s25, 0
      %p132 = por %p130, %p131
      %p133 = scmp.ne.s32.totalorder %s121, %s122
      %p134 = scmp.eq.s32.totalorder %s26, 1
      %p135 = por %p133, %p134
      %p137 = scmp.ne.s32.totalorder %s122, %s136
      %p138 = scmp.eq.s32.totalorder %s26, 0
      %p139 = por %p137, %p138
      %s141 = sadd.s32 %s140, 1
      %p144 = scmp.eq.s32.totalorder %s20, 1
      %p145 = scmp.ne.s32.totalorder %s140, %s142
      %p146 = scmp.eq.s32.totalorder %s20, 0
      %p147 = por %p145, %p146
      %p148 = scmp.ne.s32.totalorder %s140, %s142
      %p149 = scmp.eq.s32.totalorder %s25, 1
      %p150 = por %p148, %p149
      %p151 = scmp.ne.s32.totalorder %s142, %s143
      %p152 = scmp.eq.s32.totalorder %s25, 0
      %p153 = por %p151, %p152
      %p154 = scmp.ne.s32.totalorder %s142, %s143
      %p155 = scmp.eq.s32.totalorder %s26, 1
      %p156 = por %p154, %p155
      %p158 = scmp.ne.s32.totalorder %s143, %s157
      %p159 = scmp.eq.s32.totalorder %s26, 0
      %p160 = por %p158, %p159
      %s161 = ssub.s32 %s27, %s39
      %s162 = ssub.s32 %s28, %s35
      %s163 = sor.u32 %s161, %s162
      %p164 = scmp.eq.s32.totalorder %s163, 0
      %s166 = sadd.s32 %s165, 1
      %s167 = scalar_select %p164, %s165, %s166
      %p170 = pneg %p164
      %p171 = scmp.eq.s32.totalorder %s20, 1
      %p172 = por %p170, %p171
      %p173 = scmp.ne.s32.totalorder %s165, %s168
      %p174 = scmp.eq.s32.totalorder %s20, 0
      %p175 = por %p173, %p174
      %p176 = scmp.ne.s32.totalorder %s165, %s168
      %p177 = scmp.eq.s32.totalorder %s25, 1
      %p178 = por %p176, %p177
      %p179 = scmp.ne.s32.totalorder %s168, %s169
      %p180 = scmp.eq.s32.totalorder %s25, 0
      %p181 = por %p179, %p180
      %p182 = scmp.ne.s32.totalorder %s168, %s169
      %p183 = scmp.eq.s32.totalorder %s26, 1
      %p184 = por %p182, %p183
      %p186 = scmp.ne.s32.totalorder %s169, %s185
      %p187 = scmp.eq.s32.totalorder %s26, 0
      %p188 = por %p186, %p187
      %p189 = scmp.le.s32.totalorder 1, %s20
      %p190 = scmp.lt.s32.totalorder %s20, 3
      %p191 = pnand %p189, %p190
      %p192 = pneg %p191
      // Predicated region
      $region9: #{tpu_custom_call.1} parent=5 // pred_check
        _
      $region10: #{tpu_custom_call.1} parent=5 // pred_check_branch
        %194 = sbr.rel (%p191) target = $region12
      $region11: #{tpu_custom_call.1} parent=5 // pred_region
        %s195 = ssub.s32 %s20, 1
        // Predicated region
        $region13: #{tpu_custom_call.1} parent=11 // pred_check
          %p196 = pneg %p111
        $region14: #{tpu_custom_call.1} parent=11 // pred_check_branch
          %198 = sbr.rel (%p196) target = $region16
        $region15: #{tpu_custom_call.1} parent=11 // pred_region
          _
        $region16: #{tpu_custom_call.1} parent=11 // pred_fallthru
          _
        // Predicated region
        $region17: #{tpu_custom_call.1} parent=11 // pred_check
          %p199 = pneg %p132
        $region18: #{tpu_custom_call.1} parent=11 // pred_check_branch
          %201 = sbr.rel (%p199) target = $region20
        $region19: #{tpu_custom_call.1} parent=11 // pred_region
          _
        $region20: #{tpu_custom_call.1} parent=11 // pred_fallthru
          _
        // Predicated region
        $region21: #{tpu_custom_call.1} parent=11 // pred_check
          %p202 = pneg %p153
        $region22: #{tpu_custom_call.1} parent=11 // pred_check_branch
          %204 = sbr.rel (%p202) target = $region24
        $region23: #{tpu_custom_call.1} parent=11 // pred_region
          _
        $region24: #{tpu_custom_call.1} parent=11 // pred_fallthru
          _
      $region12: #{tpu_custom_call.1} parent=5 // pred_fallthru
        _
      %p205 = scmp.lt.s32.totalorder %s20, 2
      // Predicated region
      $region25: #{tpu_custom_call.1} parent=5 // pred_check
        %p206 = pneg %p205
      $region26: #{tpu_custom_call.1} parent=5 // pred_check_branch
        %208 = sbr.rel (%p206) target = $region28
      $region27: #{tpu_custom_call.1} parent=5 // pred_region
        // Predicated region
        $region29: #{tpu_custom_call.1} parent=27 // pred_check
          %p209 = pneg %p54
        $region30: #{tpu_custom_call.1} parent=27 // pred_check_branch
          %211 = sbr.rel (%p209) target = $region32
        $region31: #{tpu_custom_call.1} parent=27 // pred_region
          %s212 = sand.u32 %s44, 1
          %s213 = scalar_lea.sflag [#allocation3], %s212
          %s214 = sand.u32 %s44, 1
          %s215 = smul.addr %s214, 8
          %s216 = scalar_lea.vmem [#allocation2], %s215
          %s218 = ssub.s32 128, 128
          %219 = vsyncadd %s213, %s218
          %s220 = smul.addr %s27, 2
          %s221 = sadd.s32 %s28, %s220
          %s222 = smul.addr %s221, 128
          %s223 = scalar_lea.hbm %s0, %s222
          %s225 = sshll.u32 %s216, 4
          %s226 = int_to_ptr.vmem [resolvable:$true] %s225
          %228 = dma.hbm_to_vmem [thread:$0]  %s223, 128, %s226, %s213
        $region32: #{tpu_custom_call.1} parent=27 // pred_fallthru
          _
        // Predicated region
        $region33: #{tpu_custom_call.1} parent=27 // pred_check
          %p229 = pneg %p84
        $region34: #{tpu_custom_call.1} parent=27 // pred_check_branch
          %231 = sbr.rel (%p229) target = $region36
        $region35: #{tpu_custom_call.1} parent=27 // pred_region
          %s232 = sand.u32 %s74, 1
          %s233 = scalar_lea.sflag [#allocation6], %s232
          %s234 = sand.u32 %s74, 1
          %s235 = smul.addr %s234, 8
          %s236 = scalar_lea.vmem [#allocation5], %s235
          %s237 = sadd.s32 %s28, 1
          %s239 = ssub.s32 128, 128
          %240 = vsyncadd %s233, %s239
          %s241 = smul.addr %s27, 2
          %s242 = sadd.s32 %s237, %s241
          %s243 = smul.addr %s242, 128
          %s244 = scalar_lea.hbm %s1, %s243
          %s246 = sshll.u32 %s236, 4
          %s247 = int_to_ptr.vmem [resolvable:$true] %s246
          %249 = dma.hbm_to_vmem [thread:$0]  %s244, 128, %s247, %s233
        $region36: #{tpu_custom_call.1} parent=27 // pred_fallthru
          _
      $region28: #{tpu_custom_call.1} parent=5 // pred_fallthru
        _
      %p250 = scmp.le.s32.totalorder 1, %s20
      %p251 = scmp.lt.s32.totalorder %s20, 3
      %p252 = pnand %p250, %p251
      %p253 = pneg %p252
      // Predicated region
      $region37: #{tpu_custom_call.1} parent=5 // pred_check
        _
      $region38: #{tpu_custom_call.1} parent=5 // pred_check_branch
        %255 = sbr.rel (%p252) target = $region40
      $region39: #{tpu_custom_call.1} parent=5 // pred_region
        %s256 = ssub.s32 %s20, 1
        %s257 = sand.u32 %s47, 1
        %s258 = scalar_lea.sflag [#allocation3], %s257
        %s259 = sand.u32 %s47, 1
        %s260 = smul.addr %s259, 8
        %s261 = scalar_lea.vmem [#allocation2], %s260
        // Predicated region
        $region41: #{tpu_custom_call.1} parent=39 // pred_check
          %p262 = pneg %p60
        $region42: #{tpu_custom_call.1} parent=39 // pred_check_branch
          %264 = sbr.rel (%p262) target = $region44
        $region43: #{tpu_custom_call.1} parent=39 // pred_region
          %265 = dma.done %s258, 128
        $region44: #{tpu_custom_call.1} parent=39 // pred_fallthru
          _
        %s266 = sand.u32 %s77, 1
        %s267 = scalar_lea.sflag [#allocation6], %s266
        %s268 = sand.u32 %s77, 1
        %s269 = smul.addr %s268, 8
        %s270 = scalar_lea.vmem [#allocation5], %s269
        // Predicated region
        $region45: #{tpu_custom_call.1} parent=39 // pred_check
          %p271 = pneg %p90
        $region46: #{tpu_custom_call.1} parent=39 // pred_check_branch
          %273 = sbr.rel (%p271) target = $region48
        $region47: #{tpu_custom_call.1} parent=39 // pred_region
          %274 = dma.done %s267, 128
        $region48: #{tpu_custom_call.1} parent=39 // pred_fallthru
          _
        %s275 = sand.u32 %s47, 1
        %s276 = scalar_lea.sflag [#allocation3], %s275
        %s277 = sand.u32 %s47, 1
        %s278 = smul.addr %s277, 8
        %s279 = scalar_lea.vmem [#allocation2], %s278
        %p280 = pneg %p60
        %p281 = pneg %p57
        %s282 = sand.u32 %s77, 1
        %s283 = scalar_lea.sflag [#allocation6], %s282
        %s284 = sand.u32 %s77, 1
        %s285 = smul.addr %s284, 8
        %s286 = scalar_lea.vmem [#allocation5], %s285
        %p287 = pneg %p90
        %p288 = pneg %p87
        %p289 = pneg %p111
        %p290 = pneg %p108
        %p291 = pneg %p132
        %p292 = pneg %p129
        %p293 = pneg %p153
        %p294 = pneg %p150
        %p295 = pneg %p181
        %p296 = pneg %p178
        %s297 = sand.u32 %s168, 1
        %s298 = scalar_lea.sflag [#allocation4], %s297
        %s299 = sand.u32 %s168, 1
        %s300 = smul.addr %s299, 16
        %s301 = scalar_lea.vmem [#allocation7], %s300
        %s302 = sadd.s32 %s30, 1
        %v304 = vld [vmem:[%s261] sm:$0xff]
        %v305 = vld [vmem:[%s270] sm:$0xff]
        %v306 = vld [vmem:[%s2] sm:$0xff]
        %308 = vset.pattern.permute.xlu0 0
        %309 = vperm.xlu0 %308, %v306
        %v310 = vpop.permute.xlu0 %309
        %v312 = vmul.f32 %v310, %v304
        %313 = vrot.lane.b32.xlu0 %v304, 127
        %v314 = vpop.permute.xlu0 %313
        %315 = vrot.lane.b32.xlu0 %v305, 127
        %v316 = vpop.permute.xlu0 %315
        %v317 = vlaneseq
        %v318 = vand.u32 %v317, 127
        %vm319 = vcmp.lt.s32.totalorder %v318, 127
        %v320 = vsel %vm319, %v314, %v316
        %321 = vset.pattern.permute.xlu0 1
        %322 = vperm.xlu0 %321, %v306
        %v323 = vpop.permute.xlu0 %322
        %v325 = vmul.f32 %v323, %v320
        %v326 = vadd.f32 %v312, %v325
        %327 = vrot.lane.b32.xlu0 %v304, 126
        %v328 = vpop.permute.xlu0 %327
        %329 = vrot.lane.b32.xlu0 %v305, 126
        %v330 = vpop.permute.xlu0 %329
        %vm331 = vcmp.lt.s32.totalorder %v318, 126
        %v332 = vsel %vm331, %v328, %v330
        %333 = vset.pattern.permute.xlu0 2
        %334 = vperm.xlu0 %333, %v306
        %v335 = vpop.permute.xlu0 %334
        %v337 = vmul.f32 %v335, %v332
        %v338 = vadd.f32 %v326, %v337
        %339 = vrot.lane.b32.xlu0 %v304, 125
        %v340 = vpop.permute.xlu0 %339
        %341 = vrot.lane.b32.xlu0 %v305, 125
        %v342 = vpop.permute.xlu0 %341
        %vm343 = vcmp.lt.s32.totalorder %v318, 125
        %v344 = vsel %vm343, %v340, %v342
        %345 = vset.pattern.permute.xlu0 3
        %346 = vperm.xlu0 %345, %v306
        %v347 = vpop.permute.xlu0 %346
        %v349 = vmul.f32 %v347, %v344
        %v350 = vadd.f32 %v338, %v349
        %351 = vrot.lane.b32.xlu0 %v304, 124
        %v352 = vpop.permute.xlu0 %351
        %353 = vrot.lane.b32.xlu0 %v305, 124
        %v354 = vpop.permute.xlu0 %353
        %vm355 = vcmp.lt.s32.totalorder %v318, 124
        %v356 = vsel %vm355, %v352, %v354
        %357 = vset.pattern.permute.xlu0 4
        %358 = vperm.xlu0 %357, %v306
        %v359 = vpop.permute.xlu0 %358
        %v361 = vmul.f32 %v359, %v356
        %v362 = vadd.f32 %v350, %v361
        %v363 = vld [vmem:[%s3] sm:$0xf]
        %v364 = vld [vmem:[%s3 + $0x4] sm:$0xf]
        %v365 = vpack.c.bf16 %v362, %v362
        %v366 = vld [vmem:[%s4] sm:$0xff]
        %v367 = vld [vmem:[%s4 + $0x8] sm:$0xff]
        %369 = vset.pattern.permute.xlu0 0
        %370 = vperm.xlu0 %369, %v366
        %v371 = vpop.permute.xlu0 %370
        %374 = vset.pattern.permute.xlu0 0
        %375 = vperm.xlu0 %374, %v367
        %v376 = vpop.permute.xlu0 %375
        %v380 = vunpack.c.l.b16 %v363
        %v381 = vunpack.c.l.b16 %v364
        %v382 = vpack.c.b16 %v381, %v380
        %vm383 = vcmask 64512
        %v385 = vsel %vm383, %v382, 0
        %vm387 = vcmask 1043456
        %v389 = vsel %vm387, %v365, 0
        %391 = vmatprep.subr.bf16.mxu0 0
        %392 = vmatpush1.bf16.msra.mxu0 0
        %393 = vmatprep.subr.bf16.mxu0 0
        %394 = vmatpush1.bf16.msra.mxu0 0
        %395 = vmatprep.subr.bf16.mxu0 0
        %396 = vmatpush1.bf16.msra.mxu0 0
        %397 = vmatprep.subr.bf16.mxu0 0
        %398 = vmatpush1.bf16.msra.mxu0 0
        %399 = vmatprep.subr.bf16.mxu0 0
        %400 = vmatpush1.bf16.msra.mxu0 0
        %401 = vmatprep.subr.bf16.mxu0 0
        %402 = vmatpush1.bf16.msra.mxu0 0
        %403 = vmatprep.subr.bf16.mxu0 0
        %404 = vmatpush1.bf16.msra.mxu0 0
        %405 = vmatprep.subr.bf16.mxu0 0
        %406 = vmatpush1.bf16.msra.mxu0 %v389
        %407 = vmatprep.subr.bf16.mxu0 0
        %408 = vmatpush2.bf16.msra.mxu0 0
        %409 = vmatprep.subr.bf16.mxu0 0
        %410 = vmatpush2.bf16.msra.mxu0 0
        %411 = vmatprep.subr.bf16.mxu0 0
        %412 = vmatpush2.bf16.msra.mxu0 0
        %413 = vmatprep.subr.bf16.mxu0 0
        %414 = vmatpush2.bf16.msra.mxu0 0
        %415 = vmatprep.subr.bf16.mxu0 0
        %416 = vmatpush2.bf16.msra.mxu0 0
        %417 = vmatprep.subr.bf16.mxu0 0
        %418 = vmatpush2.bf16.msra.mxu0 0
        %419 = vmatprep.subr.bf16.mxu0 0
        %420 = vmatpush2.bf16.msra.mxu0 0
        %421 = vmatprep.subr.bf16.mxu0 0
        %422 = vmatpush2.bf16.msra.mxu0 0
        %423 = vmatprep.mubr.bf16.mxu0 0
        %424 = vmatmul.mubr.bf16.gmra.mxu0 %v385
        %v425 = vpop.f32.mrf.mxu0
        %v426 = vadd.f32 %v371, %v425
        %v427 = vpop.f32.mrf.mxu0
        %v428 = vpop.f32.mrf.mxu0
        %v429 = vadd.f32 %v376, %v428
        %v430 = vpop.f32.mrf.mxu0
        %431 = vdwg.mxu0
        %432 = vst [vmem:[%s301] sm:$0xff] %v426
        %433 = vst [vmem:[%s301 + $0x8] sm:$0xff] %v429
        %s434 = sand.u32 %s168, 1
        %s435 = scalar_lea.sflag [#allocation4], %s434
        %s436 = sand.u32 %s168, 1
        %s437 = smul.addr %s436, 16
        %s438 = scalar_lea.vmem [#allocation7], %s437
        // Predicated region
        $region49: #{tpu_custom_call.1} parent=39 // pred_check
          %p439 = pneg %p178
        $region50: #{tpu_custom_call.1} parent=39 // pred_check_branch
          %441 = sbr.rel (%p439) target = $region52
        $region51: #{tpu_custom_call.1} parent=39 // pred_region
          %s443 = ssub.s32 256, 256
          %444 = vsyncadd %s435, %s443
          %s445 = smul.addr %s29, 2
          %s446 = sadd.s32 %s30, %s445
          %s447 = smul.addr %s446, 128
          %s448 = scalar_lea.hbm %s5, %s447
          %s449 = sshll.u32 %s438, 4
          %s450 = int_to_ptr.vmem [resolvable:$true] %s449
          %455 = dma.vmem_to_hbm [thread:$0]  %s450, 256, %s448, %s435, 128, 128, 8
        $region52: #{tpu_custom_call.1} parent=39 // pred_fallthru
          _
      $region40: #{tpu_custom_call.1} parent=5 // pred_fallthru
        _
      %p456 = scmp.le.s32.totalorder 2, %s20
      // Predicated region
      $region53: #{tpu_custom_call.1} parent=5 // pred_check
        %p457 = pneg %p456
      $region54: #{tpu_custom_call.1} parent=5 // pred_check_branch
        %459 = sbr.rel (%p457) target = $region56
      $region55: #{tpu_custom_call.1} parent=5 // pred_region
        %s460 = ssub.s32 %s20, 2
        // Predicated region
        $region57: #{tpu_custom_call.1} parent=55 // pred_check
          %p461 = pneg %p184
        $region58: #{tpu_custom_call.1} parent=55 // pred_check_branch
          %463 = sbr.rel (%p461) target = $region60
        $region59: #{tpu_custom_call.1} parent=55 // pred_region
          %s464 = sand.u32 %s169, 1
          %s465 = scalar_lea.sflag [#allocation4], %s464
          %s466 = sand.u32 %s169, 1
          %s467 = smul.addr %s466, 16
          %s468 = scalar_lea.vmem [#allocation7], %s467
          %469 = dma.done %s465, 256
        $region60: #{tpu_custom_call.1} parent=55 // pred_fallthru
          _
      $region56: #{tpu_custom_call.1} parent=5 // pred_fallthru
        _
    $region6: #{tpu_custom_call.1} parent=1 // loop_footer
      %s24 = sadd.s32 1, %s20
    $region7: #{tpu_custom_call.1} parent=1 // loop_footer_branch
      %19 = sbr.rel target = $region3
    $region8: #{tpu_custom_call.1} parent=1 // loop_exit
      _
    %470 = vsyncpa [#allocation3], 1
    %s471 = scalar_lea.sflag [#allocation3], 1
    %472 = vsyncpa %s471, 1
    %473 = vsyncpa [#allocation6], 1
    %s474 = scalar_lea.sflag [#allocation6], 1
    %475 = vsyncpa %s474, 1
    %476 = vsyncpa [#allocation4], 1
    %s477 = scalar_lea.sflag [#allocation4], 1
    %478 = vsyncpa %s477, 1

</llo_original>
